<compile_context>
chip_gen: v6e
topology: v6e:2x2x1
jax: 0.10.0
libtpu: 0.0.40
codegen_flags: <defaults>
</compile_context>

<pallas_src>
import numpy as np
import jax
import jax.numpy as jnp
from jax.experimental import pallas as pl
from jax.experimental.pallas import tpu as pltpu


# ----------------------------------------------------------------------------
# Host-side constant matrices (static glue, derived from hyper-parameters only)
# ----------------------------------------------------------------------------
def _interp_matrix(e: int, n: int) -> np.ndarray:
    """M (e, n) s.t. x @ M == F.interpolate(x, size=n, mode='linear')."""
    m = np.zeros((e, n), dtype=np.float64)
    scale = e / n
    for j in range(n):
        src = max(scale * (j + 0.5) - 0.5, 0.0)
        i0 = int(np.floor(src))
        lam = src - i0
        i1 = i0 + 1 if i0 < e - 1 else i0
        m[i0, j] += 1.0 - lam
        m[i1, j] += lam
    return m.astype(np.float32)


def _dft_matrices(n: int):
    """rfft / irfft with norm='ortho' expressed as real matmuls (n even)."""
    assert n % 2 == 0, "samples_per_block must be even"
    k = n // 2 + 1
    nn = np.arange(n)[:, None]
    kk = np.arange(k)[None, :]
    ang = 2.0 * np.pi * nn * kk / n
    cos_f = np.cos(ang) / np.sqrt(n)             # Re  =  x @ cos_f      (n, k)
    sin_f = np.sin(ang) / np.sqrt(n)             # Im  = -(x @ sin_f)    (n, k)
    c = np.full((k,), 2.0)
    c[0] = 1.0
    c[-1] = 1.0                                  # Nyquist bin (n even)
    ang_i = 2.0 * np.pi * np.arange(k)[:, None] * np.arange(n)[None, :] / n
    icos = (c[:, None] * np.cos(ang_i)) / np.sqrt(n)   # (k, n)
    isin = (c[:, None] * np.sin(ang_i)) / np.sqrt(n)   # (k, n)
    return (cos_f.astype(np.float32), sin_f.astype(np.float32),
            icos.astype(np.float32), isin.astype(np.float32))


def _merged_dft_matrices(spb: int):
    """Pack the forward DFT as one (spb, 2*half) matrix (Re | Im halves, each
    zero-padded to 64 lanes -> 128 total) and the inverse DFT as one
    (2*half, spb) matrix, so rfft + irfft are two lane-dense MXU matmuls."""
    k = spb // 2 + 1
    cos_f, sin_f, icos, isin = _dft_matrices(spb)
    half = ((k + 63) // 64) * 64
    wf = np.zeros((spb, 2 * half), np.float32)
    wf[:, :k] = cos_f
    wf[:, half:half + k] = -sin_f                # Im = -(x @ sin)
    wi = np.zeros((2 * half, spb), np.float32)
    wi[:k, :] = icos
    wi[half:half + k, :] = -isin                 # irfft = Re@icos - Im@isin
    return wf, wi, half


def _diffusion_matrix(h: int, w: int) -> np.ndarray:
    """(HW, HW) matrix D implementing the 3x3 reflect-padded box mean."""
    def refl(i, n):
        if i < 0:
            return -i
        if i >= n:
            return 2 * n - 2 - i
        return i

    hw = h * w
    d = np.zeros((hw, hw), dtype=np.float64)
    for hh in range(h):
        for ww in range(w):
            p = hh * w + ww
            for dh in (-1, 0, 1):
                for dw in (-1, 0, 1):
                    q = refl(hh + dh, h) * w + refl(ww + dw, w)
                    d[p, q] += 1.0 / 9.0
    return d


def _mic_mix_matrix(h: int, w: int, mic_location, n_blocks: int) -> np.ndarray:
    """W (n_blocks, n_blocks*HW) with W[i, j*HW:(j+1)*HW] = e_mic^T D^{i-j}
    for j<=i (else 0), so mic_out = W @ stacked_filtered with NO carry."""
    hw = h * w
    d = _diffusion_matrix(h, w)
    row = np.zeros((hw,), np.float64)
    row[mic_location[0] * w + mic_location[1]] = 1.0
    rows = [row]
    for _ in range(1, n_blocks):
        rows.append(rows[-1] @ d)
    wmix = np.zeros((n_blocks, n_blocks * hw), np.float64)
    for i in range(n_blocks):
        for j in range(i + 1):
            wmix[i, j * hw:(j + 1) * hw] = rows[i - j]
    return wmix.astype(np.float32)


# ----------------------------------------------------------------------------
# Pallas kernel: whole forward pass in a single invocation (no carry).
# ----------------------------------------------------------------------------
def _kernel(imp_ref, noise_ref, r_ref, interp_ref, wf_ref, wi_ref, wmix_ref,
            out_ref):
    # Envelope for all blocks at once: (n_blocks*HW, spb).
    env = jnp.dot(imp_ref[...], interp_ref[...],
                  preferred_element_type=jnp.float32)
    env = jnp.clip(env, 0.0, 1.0) * noise_ref[...]

    # Merged rfft (ortho): Re in lanes [0, half), Im in lanes [half, 2*half).
    spec = jnp.dot(env.astype(jnp.bfloat16), wf_ref[...],
                   preferred_element_type=jnp.float32)

    # Real transfer function (clamped), duplicated over Re/Im halves, zero pad.
    r = jnp.clip(r_ref[...], 0.0, 1.0)
    fspec = r * spec

    # Merged irfft (ortho): (n_blocks*HW, spb).
    filt = jnp.dot(fspec.astype(jnp.bfloat16), wi_ref[...],
                   preferred_element_type=jnp.float32)

    # All mic taps in one matmul: block-lower-triangular mix of e_mic^T D^p.
    out_ref[...] = jnp.dot(wmix_ref[...], filt,
                           preferred_element_type=jnp.float32)


def model_forward(x, impulses, transfer_functions, noise, *, room_dim,
                  mic_location, samples_per_block, n_samples):
    del x  # Model.forward never reads its input.
    h, w = room_dim
    hw = h * w
    spb = samples_per_block
    assert spb % 2 == 0, "samples_per_block must be even"
    n_blocks = impulses.shape[0]
    env_size = impulses.shape[-1]
    k = spb // 2 + 1
    rows = n_blocks * hw

    # Static matrices.
    wf_np, wi_np, half = _merged_dft_matrices(spb)
    interp = jnp.asarray(_interp_matrix(env_size, spb))                  # f32
    wf = jnp.asarray(wf_np, dtype=jnp.bfloat16)                          # bf16
    wi = jnp.asarray(wi_np, dtype=jnp.bfloat16)                          # bf16
    wmix = jnp.asarray(_mic_mix_matrix(h, w, mic_location, n_blocks))    # f32

    # Stack all blocks along the row (sublane) axis.
    imp = impulses.reshape(rows, env_size).astype(jnp.float32)
    nz = noise.reshape(rows, spb).astype(jnp.float32)
    tf = transfer_functions.reshape(rows, k).astype(jnp.float32)
    tf_pad = jnp.pad(tf, ((0, 0), (0, half - k)))
    r_dup = jnp.concatenate([tf_pad, tf_pad], axis=1)                    # (rows, 2*half)

    def full2d(shape):
        return pl.BlockSpec(shape, lambda i: (0, 0))

    grid_spec = pltpu.PrefetchScalarGridSpec(
        num_scalar_prefetch=0,
        grid=(1,),
        in_specs=[
            full2d((rows, env_size)),       # impulses      (256, 8)
            full2d((rows, spb)),            # noise         (256, 64)
            full2d((rows, 2 * half)),       # resonance dup (256, 128)
            full2d((env_size, spb)),        # interp        (8, 64)
            full2d((spb, 2 * half)),        # fwd DFT       (64, 128)
            full2d((2 * half, spb)),        # inv DFT       (128, 64)
            full2d((n_blocks, rows)),       # mic mix       (4, 256)
        ],
        out_specs=full2d((n_blocks, spb)),
    )

    mic_out = pl.pallas_call(
        _kernel,
        out_shape=jax.ShapeDtypeStruct((n_blocks, spb), jnp.float32),
        grid_spec=grid_spec,
        compiler_params=pltpu.CompilerParams(
            dimension_semantics=("arbitrary",)),
    )(imp, nz, r_dup, interp, wf, wi, wmix)

    return mic_out.reshape(1, 1, -1)[..., :n_samples]


# ----------------------------------------------------------------------------
# Pure-JAX reference (f32, explicit per-block loop, jnp.fft, reflect pad).
# ----------------------------------------------------------------------------
def reference_forward(impulses, transfer_functions, noise, *, room_dim,
                      mic_location, samples_per_block, n_samples):
    h, w = room_dim
    spb = samples_per_block
    n_blocks = impulses.shape[0]
    env_size = impulses.shape[-1]
    interp = jnp.asarray(_interp_matrix(env_size, spb))
    sf = jnp.zeros((h, w, spb), jnp.float32)
    outs = []
    for i in range(n_blocks):
        env = jnp.einsum('hwe,et->hwt', impulses[i], interp)
        env = jnp.clip(env, 0.0, 1.0) * noise[i]
        r = jnp.clip(transfer_functions[i], 0.0, 1.0)
        spec = jnp.fft.rfft(env, axis=-1, norm='ortho')
        filt = jnp.fft.irfft(r * spec, n=spb, axis=-1, norm='ortho')
        sf = sf + filt
        outs.append(sf[mic_location[0], mic_location[1]][None, :])
        sf_p = jnp.pad(sf, ((1, 1), (1, 1), (0, 0)), mode='reflect')
        acc = sum(sf_p[dh:dh + h, dw:dw + w, :]
                  for dh in range(3) for dw in range(3))
        sf = acc / 9.0
    return jnp.concatenate(outs, axis=0).reshape(1, 1, -1)[..., :n_samples]


if __name__ == "__main__":
    # Small, self-consistent configuration.
    n_samples = 256
    samples_per_block = 64
    room_dim = (8, 8)
    mic_location = (4, 4)
    impulse_envelope_size = 8
    n_blocks = n_samples // samples_per_block
    k = samples_per_block // 2 + 1
    h, w = room_dim

    key = jax.random.PRNGKey(0)
    k_tf, k_imp, k_noise = jax.random.split(key, 3)
    transfer_functions = jax.random.uniform(
        k_tf, (n_blocks, h, w, k), minval=0.0, maxval=1.0, dtype=jnp.float32)
    impulses = jax.random.uniform(
        k_imp, (n_blocks, h, w, impulse_envelope_size),
        minval=0.0, maxval=0.001, dtype=jnp.float32)
    noise = jax.random.uniform(
        k_noise, (n_blocks, h, w, samples_per_block),
        minval=-1.0, maxval=1.0, dtype=jnp.float32)

    x = jnp.zeros((1, 1, n_samples), jnp.float32)  # unused by the forward pass

    out = model_forward(
        x, impulses, transfer_functions, noise,
        room_dim=room_dim, mic_location=mic_location,
        samples_per_block=samples_per_block, n_samples=n_samples)
    out = jax.block_until_ready(out)
    assert out.shape == (1, 1, n_samples), out.shape

    ref = reference_forward(
        impulses, transfer_functions, noise,
        room_dim=room_dim, mic_location=mic_location,
        samples_per_block=samples_per_block, n_samples=n_samples)
    ref = jax.block_until_ready(ref)

    err = float(jnp.max(jnp.abs(out - ref)))
    scale = float(jnp.max(jnp.abs(ref))) + 1e-12
    assert err / scale < 5e-2, ("mismatch vs reference", err, scale)

    print("KERNEL_OK")
</pallas_src>

<mosaic_0001>
module attributes {stable_mosaic.version = 11 : i64} {
  func.func @_kernel(%arg0: i32, %arg1: memref<256x8xf32, #tpu.memory_space<vmem>>, %arg2: memref<256x64xf32, #tpu.memory_space<vmem>>, %arg3: memref<256x128xf32, #tpu.memory_space<vmem>>, %arg4: memref<8x64xf32, #tpu.memory_space<vmem>>, %arg5: memref<64x128xbf16, #tpu.memory_space<vmem>>, %arg6: memref<128x64xbf16, #tpu.memory_space<vmem>>, %arg7: memref<4x256xf32, #tpu.memory_space<vmem>>, %arg8: memref<4x64xf32, #tpu.memory_space<vmem>>) attributes {dimension_semantics = [#tpu.dimension_semantics<arbitrary>], iteration_bounds = array<i64: 1>, scalar_prefetch = 0 : i64, scratch_operands = 0 : i64, tpu.core_type = #tpu.core_type<tc>, window_params = [{pipeline_mode = #tpu.pipeline_mode<synchronous>, transform_indices = @transform_0, window_bounds = array<i64: 256, 8>}, {pipeline_mode = #tpu.pipeline_mode<synchronous>, transform_indices = @transform_1, window_bounds = array<i64: 256, 64>}, {pipeline_mode = #tpu.pipeline_mode<synchronous>, transform_indices = @transform_2, window_bounds = array<i64: 256, 128>}, {pipeline_mode = #tpu.pipeline_mode<synchronous>, transform_indices = @transform_3, window_bounds = array<i64: 8, 64>}, {pipeline_mode = #tpu.pipeline_mode<synchronous>, transform_indices = @transform_4, window_bounds = array<i64: 64, 128>}, {pipeline_mode = #tpu.pipeline_mode<synchronous>, transform_indices = @transform_5, window_bounds = array<i64: 128, 64>}, {pipeline_mode = #tpu.pipeline_mode<synchronous>, transform_indices = @transform_6, window_bounds = array<i64: 4, 256>}, {pipeline_mode = #tpu.pipeline_mode<synchronous>, transform_indices = @transform_7, window_bounds = array<i64: 4, 64>}]} {
    %c0 = arith.constant 0 : index
    %c0_0 = arith.constant 0 : index
    %0 = vector.load %arg1[%c0, %c0_0] : memref<256x8xf32, #tpu.memory_space<vmem>>, vector<256x8xf32>
    %c0_1 = arith.constant 0 : index
    %c0_2 = arith.constant 0 : index
    %1 = vector.load %arg4[%c0_1, %c0_2] : memref<8x64xf32, #tpu.memory_space<vmem>>, vector<8x64xf32>
    %cst = arith.constant dense<0.000000e+00> : vector<256x64xf32>
    %2 = tpu.matmul %0, %1, %cst {dimension_numbers = #tpu.dot_dimension_numbers<[1], [0], [0], [1], [0, 0, 1, 1], [], []>} : vector<256x8xf32>, vector<8x64xf32>, vector<256x64xf32> -> vector<256x64xf32>
    %cst_3 = arith.constant 0.000000e+00 : f32
    %cst_4 = arith.constant 1.000000e+00 : f32
    %3 = vector.broadcast %cst_3 : f32 to vector<256x64xf32>
    %4 = arith.maximumf %3, %2 : vector<256x64xf32>
    %5 = vector.broadcast %cst_4 : f32 to vector<256x64xf32>
    %6 = arith.minimumf %5, %4 : vector<256x64xf32>
    %c0_5 = arith.constant 0 : index
    %c0_6 = arith.constant 0 : index
    %7 = vector.load %arg2[%c0_5, %c0_6] : memref<256x64xf32, #tpu.memory_space<vmem>>, vector<256x64xf32>
    %8 = arith.mulf %6, %7 : vector<256x64xf32>
    %9 = arith.truncf %8 : vector<256x64xf32> to vector<256x64xbf16>
    %c0_7 = arith.constant 0 : index
    %c0_8 = arith.constant 0 : index
    %10 = vector.load %arg5[%c0_7, %c0_8] : memref<64x128xbf16, #tpu.memory_space<vmem>>, vector<64x128xbf16>
    %cst_9 = arith.constant dense<0.000000e+00> : vector<256x128xf32>
    %11 = tpu.matmul %9, %10, %cst_9 {dimension_numbers = #tpu.dot_dimension_numbers<[1], [0], [0], [1], [0, 0, 1, 1], [], []>} : vector<256x64xbf16>, vector<64x128xbf16>, vector<256x128xf32> -> vector<256x128xf32>
    %c0_10 = arith.constant 0 : index
    %c0_11 = arith.constant 0 : index
    %12 = vector.load %arg3[%c0_10, %c0_11] : memref<256x128xf32, #tpu.memory_space<vmem>>, vector<256x128xf32>
    %cst_12 = arith.constant 0.000000e+00 : f32
    %cst_13 = arith.constant 1.000000e+00 : f32
    %13 = vector.broadcast %cst_12 : f32 to vector<256x128xf32>
    %14 = arith.maximumf %13, %12 : vector<256x128xf32>
    %15 = vector.broadcast %cst_13 : f32 to vector<256x128xf32>
    %16 = arith.minimumf %15, %14 : vector<256x128xf32>
    %17 = arith.mulf %16, %11 : vector<256x128xf32>
    %18 = arith.truncf %17 : vector<256x128xf32> to vector<256x128xbf16>
    %c0_14 = arith.constant 0 : index
    %c0_15 = arith.constant 0 : index
    %19 = vector.load %arg6[%c0_14, %c0_15] : memref<128x64xbf16, #tpu.memory_space<vmem>>, vector<128x64xbf16>
    %cst_16 = arith.constant dense<0.000000e+00> : vector<256x64xf32>
    %20 = tpu.matmul %18, %19, %cst_16 {dimension_numbers = #tpu.dot_dimension_numbers<[1], [0], [0], [1], [0, 0, 1, 1], [], []>} : vector<256x128xbf16>, vector<128x64xbf16>, vector<256x64xf32> -> vector<256x64xf32>
    %c0_17 = arith.constant 0 : index
    %c0_18 = arith.constant 0 : index
    %21 = vector.load %arg7[%c0_17, %c0_18] : memref<4x256xf32, #tpu.memory_space<vmem>>, vector<4x256xf32>
    %cst_19 = arith.constant dense<0.000000e+00> : vector<4x64xf32>
    %22 = tpu.matmul %21, %20, %cst_19 {dimension_numbers = #tpu.dot_dimension_numbers<[1], [0], [0], [1], [0, 0, 1, 1], [], []>} : vector<4x256xf32>, vector<256x64xf32>, vector<4x64xf32> -> vector<4x64xf32>
    %c0_20 = arith.constant 0 : index
    %c0_21 = arith.constant 0 : index
    %23 = vector.load %arg8[%c0_20, %c0_21] : memref<4x64xf32, #tpu.memory_space<vmem>>, vector<4x64xf32>
    tpu.vector_store %arg8[%c0_20, %c0_21], %22 {strides = array<i32>} : memref<4x64xf32, #tpu.memory_space<vmem>>, vector<4x64xf32>,
    return
  }
  func.func @transform_0(%arg0: i32) -> (i32, i32) {
    %c0_i32 = arith.constant 0 : i32
    %c0_i32_0 = arith.constant 0 : i32
    %c0_i32_1 = arith.constant 0 : i32
    return %c0_i32, %c0_i32_0 : i32, i32
  }
  func.func @transform_1(%arg0: i32) -> (i32, i32) {
    %c0_i32 = arith.constant 0 : i32
    %c0_i32_0 = arith.constant 0 : i32
    %c0_i32_1 = arith.constant 0 : i32
    return %c0_i32, %c0_i32_0 : i32, i32
  }
  func.func @transform_2(%arg0: i32) -> (i32, i32) {
    %c0_i32 = arith.constant 0 : i32
    %c0_i32_0 = arith.constant 0 : i32
    %c0_i32_1 = arith.constant 0 : i32
    return %c0_i32, %c0_i32_0 : i32, i32
  }
  func.func @transform_3(%arg0: i32) -> (i32, i32) {
    %c0_i32 = arith.constant 0 : i32
    %c0_i32_0 = arith.constant 0 : i32
    %c0_i32_1 = arith.constant 0 : i32
    return %c0_i32, %c0_i32_0 : i32, i32
  }
  func.func @transform_4(%arg0: i32) -> (i32, i32) {
    %c0_i32 = arith.constant 0 : i32
    %c0_i32_0 = arith.constant 0 : i32
    %c0_i32_1 = arith.constant 0 : i32
    return %c0_i32, %c0_i32_0 : i32, i32
  }
  func.func @transform_5(%arg0: i32) -> (i32, i32) {
    %c0_i32 = arith.constant 0 : i32
    %c0_i32_0 = arith.constant 0 : i32
    %c0_i32_1 = arith.constant 0 : i32
    return %c0_i32, %c0_i32_0 : i32, i32
  }
  func.func @transform_6(%arg0: i32) -> (i32, i32) {
    %c0_i32 = arith.constant 0 : i32
    %c0_i32_0 = arith.constant 0 : i32
    %c0_i32_1 = arith.constant 0 : i32
    return %c0_i32, %c0_i32_0 : i32, i32
  }
  func.func @transform_7(%arg0: i32) -> (i32, i32) {
    %c0_i32 = arith.constant 0 : i32
    %c0_i32_0 = arith.constant 0 : i32
    %c0_i32_1 = arith.constant 0 : i32
    return %c0_i32, %c0_i32_0 : i32, i32
  }
}

</mosaic_0001>

<llo_original>
// kernel: tpu_custom_call.1
$region0: #{tpu_custom_call.1}
  #allocation0 [shape = 'u32[]', space=smem, size = 0x4, offset = 0x4, fixed_abs, tag = 'smem constant byte address 0x4 - core index']
  #allocation1 [shape = 'u32[144,128]{1,0:T(1,128)}', space=vmem, size = 0x12000, scoped, tag = 'internal scratch']
  %s0 = inlined_call_operand.vmem [shape: f32[256,8], index: 0, kind: input, shape index: {}]
  %s1 = inlined_call_operand.vmem [shape: f32[256,64], index: 1, kind: input, shape index: {}]
  %s2 = inlined_call_operand.vmem [shape: f32[256,128], index: 2, kind: input, shape index: {}]
  %s3 = inlined_call_operand.vmem [shape: f32[8,64], index: 3, kind: input, shape index: {}]
  %s4 = inlined_call_operand.vmem [shape: bf16[64,128], index: 4, kind: input, shape index: {}]
  %s5 = inlined_call_operand.vmem [shape: bf16[128,64], index: 5, kind: input, shape index: {}]
  %s6 = inlined_call_operand.vmem [shape: f32[4,256], index: 6, kind: input, shape index: {}]
  %s7 = inlined_call_operand.hbm [shape: f32[4,64], index: 7, kind: output, shape index: {}]
  %s8 = sld [smem:[#allocation0]]
  $region38: #{tpu_custom_call.1} parent=0
    _
  %s10 = ssub.s32 1, %s8
  %s11 = scalar_select 0, %s10, %s8
  $region1: #{tpu_custom_call.1} parent=0
    #allocation2 [shape = 'u8[2048]{0}', space=vmem, size = 0x800, scoped, tag = 'output window, operand 0, single buffered']
    #allocation3 [shape = 's32[1]{0}', space=sflag, size = 0x4, scoped, tag = 'scoped memory for tpu_custom_call.1']
    %12 = vsyncpa [#allocation3], 0
    // Predicated region
    $region2: #{tpu_custom_call.1} parent=1 // pred_check
      _
    $region3: #{tpu_custom_call.1} parent=1 // pred_check_branch
      %14 = sbr.rel (0) target = $region5
    $region4: #{tpu_custom_call.1} parent=1 // pred_region
      _
    $region5: #{tpu_custom_call.1} parent=1 // pred_fallthru
      _
    // Predicated region
    $region6: #{tpu_custom_call.1} parent=1 // pred_check
      _
    $region7: #{tpu_custom_call.1} parent=1 // pred_check_branch
      %16 = sbr.rel (0) target = $region9
    $region8: #{tpu_custom_call.1} parent=1 // pred_region
      _
    $region9: #{tpu_custom_call.1} parent=1 // pred_fallthru
      _
    // Predicated region
    $region10: #{tpu_custom_call.1} parent=1 // pred_check
      _
    $region11: #{tpu_custom_call.1} parent=1 // pred_check_branch
      %18 = sbr.rel (0) target = $region13
    $region12: #{tpu_custom_call.1} parent=1 // pred_region
      _
    $region13: #{tpu_custom_call.1} parent=1 // pred_fallthru
      _
    // Predicated region
    $region14: #{tpu_custom_call.1} parent=1 // pred_check
      _
    $region15: #{tpu_custom_call.1} parent=1 // pred_check_branch
      %20 = sbr.rel (0) target = $region17
    $region16: #{tpu_custom_call.1} parent=1 // pred_region
      _
    $region17: #{tpu_custom_call.1} parent=1 // pred_fallthru
      _
    // Predicated region
    $region18: #{tpu_custom_call.1} parent=1 // pred_check
      _
    $region19: #{tpu_custom_call.1} parent=1 // pred_check_branch
      %22 = sbr.rel (0) target = $region21
    $region20: #{tpu_custom_call.1} parent=1 // pred_region
      _
    $region21: #{tpu_custom_call.1} parent=1 // pred_fallthru
      _
    // Predicated region
    $region22: #{tpu_custom_call.1} parent=1 // pred_check
      _
    $region23: #{tpu_custom_call.1} parent=1 // pred_check_branch
      %24 = sbr.rel (0) target = $region25
    $region24: #{tpu_custom_call.1} parent=1 // pred_region
      _
    $region25: #{tpu_custom_call.1} parent=1 // pred_fallthru
      _
    // Predicated region
    $region26: #{tpu_custom_call.1} parent=1 // pred_check
      _
    $region27: #{tpu_custom_call.1} parent=1 // pred_check_branch
      %26 = sbr.rel (0) target = $region29
    $region28: #{tpu_custom_call.1} parent=1 // pred_region
      _
    $region29: #{tpu_custom_call.1} parent=1 // pred_fallthru
      _
    %v28 = vld [vmem:[%s0] sm:$0xff]
    %v29 = vld [vmem:[%s0 + $0x8] sm:$0xff]
    %v30 = vld [vmem:[%s0 + $0x10] sm:$0xff]
    %v31 = vld [vmem:[%s0 + $0x18] sm:$0xff]
    %v32 = vld [vmem:[%s0 + $0x20] sm:$0xff]
    %v33 = vld [vmem:[%s0 + $0x28] sm:$0xff]
    %v34 = vld [vmem:[%s0 + $0x30] sm:$0xff]
    %v35 = vld [vmem:[%s0 + $0x38] sm:$0xff]
    %v36 = vld [vmem:[%s0 + $0x40] sm:$0xff]
    %v37 = vld [vmem:[%s0 + $0x48] sm:$0xff]
    %v38 = vld [vmem:[%s0 + $0x50] sm:$0xff]
    %v39 = vld [vmem:[%s0 + $0x58] sm:$0xff]
    %v40 = vld [vmem:[%s0 + $0x60] sm:$0xff]
    %v41 = vld [vmem:[%s0 + $0x68] sm:$0xff]
    %v42 = vld [vmem:[%s0 + $0x70] sm:$0xff]
    %v43 = vld [vmem:[%s0 + $0x78] sm:$0xff]
    %v44 = vld [vmem:[%s0 + $0x80] sm:$0xff]
    %v45 = vld [vmem:[%s0 + $0x88] sm:$0xff]
    %v46 = vld [vmem:[%s0 + $0x90] sm:$0xff]
    %v47 = vld [vmem:[%s0 + $0x98] sm:$0xff]
    %v48 = vld [vmem:[%s0 + $0xa0] sm:$0xff]
    %v49 = vld [vmem:[%s0 + $0xa8] sm:$0xff]
    %v50 = vld [vmem:[%s0 + $0xb0] sm:$0xff]
    %v51 = vld [vmem:[%s0 + $0xb8] sm:$0xff]
    %v52 = vld [vmem:[%s0 + $0xc0] sm:$0xff]
    %v53 = vld [vmem:[%s0 + $0xc8] sm:$0xff]
    %v54 = vld [vmem:[%s0 + $0xd0] sm:$0xff]
    %v55 = vld [vmem:[%s0 + $0xd8] sm:$0xff]
    %v56 = vld [vmem:[%s0 + $0xe0] sm:$0xff]
    %v57 = vld [vmem:[%s0 + $0xe8] sm:$0xff]
    %v58 = vld [vmem:[%s0 + $0xf0] sm:$0xff]
    %v59 = vld [vmem:[%s0 + $0xf8] sm:$0xff]
    %v60 = vld [vmem:[%s3] sm:$0xff]
    %vm61 = vcmask 64512
    %v63 = vsel %vm61, %v28, 0
    %v66 = vsel %vm61, %v29, 0
    %v69 = vsel %vm61, %v30, 0
    %v72 = vsel %vm61, %v31, 0
    %v75 = vsel %vm61, %v32, 0
    %v78 = vsel %vm61, %v33, 0
    %v81 = vsel %vm61, %v34, 0
    %v84 = vsel %vm61, %v35, 0
    %v87 = vsel %vm61, %v36, 0
    %v90 = vsel %vm61, %v37, 0
    %v93 = vsel %vm61, %v38, 0
    %v96 = vsel %vm61, %v39, 0
    %v99 = vsel %vm61, %v40, 0
    %v102 = vsel %vm61, %v41, 0
    %v105 = vsel %vm61, %v42, 0
    %v108 = vsel %vm61, %v43, 0
    %v111 = vsel %vm61, %v44, 0
    %v114 = vsel %vm61, %v45, 0
    %v117 = vsel %vm61, %v46, 0
    %v120 = vsel %vm61, %v47, 0
    %v123 = vsel %vm61, %v48, 0
    %v126 = vsel %vm61, %v49, 0
    %v129 = vsel %vm61, %v50, 0
    %v132 = vsel %vm61, %v51, 0
    %v135 = vsel %vm61, %v52, 0
    %v138 = vsel %vm61, %v53, 0
    %v141 = vsel %vm61, %v54, 0
    %v144 = vsel %vm61, %v55, 0
    %v147 = vsel %vm61, %v56, 0
    %v150 = vsel %vm61, %v57, 0
    %v153 = vsel %vm61, %v58, 0
    %v156 = vsel %vm61, %v59, 0
    %158 = vmatprep.subr.mxu0 0.0
    %159 = vmatpush1.msra.mxu0 0.0
    %160 = vmatprep.subr.mxu0 0.0
    %161 = vmatpush1.msra.mxu0 0.0
    %162 = vmatprep.subr.mxu0 0.0
    %163 = vmatpush1.msra.mxu0 0.0
    %164 = vmatprep.subr.mxu0 0.0
    %165 = vmatpush1.msra.mxu0 0.0
    %166 = vmatprep.subr.mxu0 0.0
    %167 = vmatpush1.msra.mxu0 0.0
    %168 = vmatprep.subr.mxu0 0.0
    %169 = vmatpush1.msra.mxu0 0.0
    %170 = vmatprep.subr.mxu0 0.0
    %171 = vmatpush1.msra.mxu0 0.0
    %172 = vmatprep.subr.mxu0 0.0
    %173 = vmatpush1.msra.mxu0 0.0
    %174 = vmatprep.subr.mxu0 0.0
    %175 = vmatpush1.msra.mxu0 0.0
    %176 = vmatprep.subr.mxu0 0.0
    %177 = vmatpush1.msra.mxu0 0.0
    %178 = vmatprep.subr.mxu0 0.0
    %179 = vmatpush1.msra.mxu0 0.0
    %180 = vmatprep.subr.mxu0 0.0
    %181 = vmatpush1.msra.mxu0 0.0
    %182 = vmatprep.subr.mxu0 0.0
    %183 = vmatpush1.msra.mxu0 0.0
    %184 = vmatprep.subr.mxu0 0.0
    %185 = vmatpush1.msra.mxu0 0.0
    %186 = vmatprep.subr.mxu0 0.0
    %187 = vmatpush1.msra.mxu0 0.0
    %188 = vmatprep.subr.mxu0 0.0
    %189 = vmatpush1.msra.mxu0 %v60
    %190 = vmatprep.subr.mxu0 0.0
    %191 = vmatpush2.msra.mxu0 0.0
    %192 = vmatprep.subr.mxu0 0.0
    %193 = vmatpush2.msra.mxu0 0.0
    %194 = vmatprep.subr.mxu0 0.0
    %195 = vmatpush2.msra.mxu0 0.0
    %196 = vmatprep.subr.mxu0 0.0
    %197 = vmatpush2.msra.mxu0 0.0
    %198 = vmatprep.subr.mxu0 0.0
    %199 = vmatpush2.msra.mxu0 0.0
    %200 = vmatprep.subr.mxu0 0.0
    %201 = vmatpush2.msra.mxu0 0.0
    %202 = vmatprep.subr.mxu0 0.0
    %203 = vmatpush2.msra.mxu0 0.0
    %204 = vmatprep.subr.mxu0 0.0
    %205 = vmatpush2.msra.mxu0 0.0
    %206 = vmatprep.subr.mxu0 0.0
    %207 = vmatpush2.msra.mxu0 0.0
    %208 = vmatprep.subr.mxu0 0.0
    %209 = vmatpush2.msra.mxu0 0.0
    %210 = vmatprep.subr.mxu0 0.0
    %211 = vmatpush2.msra.mxu0 0.0
    %212 = vmatprep.subr.mxu0 0.0
    %213 = vmatpush2.msra.mxu0 0.0
    %214 = vmatprep.subr.mxu0 0.0
    %215 = vmatpush2.msra.mxu0 0.0
    %216 = vmatprep.subr.mxu0 0.0
    %217 = vmatpush2.msra.mxu0 0.0
    %218 = vmatprep.subr.mxu0 0.0
    %219 = vmatpush2.msra.mxu0 0.0
    %220 = vmatprep.subr.mxu0 0.0
    %221 = vmatpush2.msra.mxu0 0.0
    %222 = vmatprep.mubr.f32.mxu0 0.0
    %223 = vmatmul.mubr.f32.gmra.mxu0 %v63
    %v224 = vpop.f32.mrf.mxu0
    %v225 = vadd.f32 0.0, %v224
    %v226 = vpop.f32.mrf.mxu0
    %227 = vmatprep.mubr.f32.mxu0 0.0
    %228 = vmatmul.mubr.f32.gmra.mxu0 %v66
    %v229 = vpop.f32.mrf.mxu0
    %v230 = vadd.f32 0.0, %v229
    %v231 = vpop.f32.mrf.mxu0
    %232 = vmatprep.mubr.f32.mxu0 0.0
    %233 = vmatmul.mubr.f32.gmra.mxu0 %v69
    %v234 = vpop.f32.mrf.mxu0
    %v235 = vadd.f32 0.0, %v234
    %v236 = vpop.f32.mrf.mxu0
    %237 = vmatprep.mubr.f32.mxu0 0.0
    %238 = vmatmul.mubr.f32.gmra.mxu0 %v72
    %v239 = vpop.f32.mrf.mxu0
    %v240 = vadd.f32 0.0, %v239
    %v241 = vpop.f32.mrf.mxu0
    %242 = vmatprep.mubr.f32.mxu0 0.0
    %243 = vmatmul.mubr.f32.gmra.mxu0 %v75
    %v244 = vpop.f32.mrf.mxu0
    %v245 = vadd.f32 0.0, %v244
    %v246 = vpop.f32.mrf.mxu0
    %247 = vmatprep.mubr.f32.mxu0 0.0
    %248 = vmatmul.mubr.f32.gmra.mxu0 %v78
    %v249 = vpop.f32.mrf.mxu0
    %v250 = vadd.f32 0.0, %v249
    %v251 = vpop.f32.mrf.mxu0
    %252 = vmatprep.mubr.f32.mxu0 0.0
    %253 = vmatmul.mubr.f32.gmra.mxu0 %v81
    %v254 = vpop.f32.mrf.mxu0
    %v255 = vadd.f32 0.0, %v254
    %v256 = vpop.f32.mrf.mxu0
    %257 = vmatprep.mubr.f32.mxu0 0.0
    %258 = vmatmul.mubr.f32.gmra.mxu0 %v84
    %v259 = vpop.f32.mrf.mxu0
    %v260 = vadd.f32 0.0, %v259
    %v261 = vpop.f32.mrf.mxu0
    %262 = vmatprep.mubr.f32.mxu0 0.0
    %263 = vmatmul.mubr.f32.gmra.mxu0 %v87
    %v264 = vpop.f32.mrf.mxu0
    %v265 = vadd.f32 0.0, %v264
    %v266 = vpop.f32.mrf.mxu0
    %267 = vmatprep.mubr.f32.mxu0 0.0
    %268 = vmatmul.mubr.f32.gmra.mxu0 %v90
    %v269 = vpop.f32.mrf.mxu0
    %v270 = vadd.f32 0.0, %v269
    %v271 = vpop.f32.mrf.mxu0
    %272 = vmatprep.mubr.f32.mxu0 0.0
    %273 = vmatmul.mubr.f32.gmra.mxu0 %v93
    %v274 = vpop.f32.mrf.mxu0
    %v275 = vadd.f32 0.0, %v274
    %v276 = vpop.f32.mrf.mxu0
    %277 = vmatprep.mubr.f32.mxu0 0.0
    %278 = vmatmul.mubr.f32.gmra.mxu0 %v96
    %v279 = vpop.f32.mrf.mxu0
    %v280 = vadd.f32 0.0, %v279
    %v281 = vpop.f32.mrf.mxu0
    %282 = vmatprep.mubr.f32.mxu0 0.0
    %283 = vmatmul.mubr.f32.gmra.mxu0 %v99
    %v284 = vpop.f32.mrf.mxu0
    %v285 = vadd.f32 0.0, %v284
    %v286 = vpop.f32.mrf.mxu0
    %287 = vmatprep.mubr.f32.mxu0 0.0
    %288 = vmatmul.mubr.f32.gmra.mxu0 %v102
    %v289 = vpop.f32.mrf.mxu0
    %v290 = vadd.f32 0.0, %v289
    %v291 = vpop.f32.mrf.mxu0
    %292 = vmatprep.mubr.f32.mxu0 0.0
    %293 = vmatmul.mubr.f32.gmra.mxu0 %v105
    %v294 = vpop.f32.mrf.mxu0
    %v295 = vadd.f32 0.0, %v294
    %v296 = vpop.f32.mrf.mxu0
    %297 = vmatprep.mubr.f32.mxu0 0.0
    %298 = vmatmul.mubr.f32.gmra.mxu0 %v108
    %v299 = vpop.f32.mrf.mxu0
    %v300 = vadd.f32 0.0, %v299
    %v301 = vpop.f32.mrf.mxu0
    %302 = vmatprep.mubr.f32.mxu0 0.0
    %303 = vmatmul.mubr.f32.gmra.mxu0 %v111
    %v304 = vpop.f32.mrf.mxu0
    %v305 = vadd.f32 0.0, %v304
    %v306 = vpop.f32.mrf.mxu0
    %307 = vmatprep.mubr.f32.mxu0 0.0
    %308 = vmatmul.mubr.f32.gmra.mxu0 %v114
    %v309 = vpop.f32.mrf.mxu0
    %v310 = vadd.f32 0.0, %v309
    %v311 = vpop.f32.mrf.mxu0
    %312 = vmatprep.mubr.f32.mxu0 0.0
    %313 = vmatmul.mubr.f32.gmra.mxu0 %v117
    %v314 = vpop.f32.mrf.mxu0
    %v315 = vadd.f32 0.0, %v314
    %v316 = vpop.f32.mrf.mxu0
    %317 = vmatprep.mubr.f32.mxu0 0.0
    %318 = vmatmul.mubr.f32.gmra.mxu0 %v120
    %v319 = vpop.f32.mrf.mxu0
    %v320 = vadd.f32 0.0, %v319
    %v321 = vpop.f32.mrf.mxu0
    %322 = vmatprep.mubr.f32.mxu0 0.0
    %323 = vmatmul.mubr.f32.gmra.mxu0 %v123
    %v324 = vpop.f32.mrf.mxu0
    %v325 = vadd.f32 0.0, %v324
    %v326 = vpop.f32.mrf.mxu0
    %327 = vmatprep.mubr.f32.mxu0 0.0
    %328 = vmatmul.mubr.f32.gmra.mxu0 %v126
    %v329 = vpop.f32.mrf.mxu0
    %v330 = vadd.f32 0.0, %v329
    %v331 = vpop.f32.mrf.mxu0
    %332 = vmatprep.mubr.f32.mxu0 0.0
    %333 = vmatmul.mubr.f32.gmra.mxu0 %v129
    %v334 = vpop.f32.mrf.mxu0
    %v335 = vadd.f32 0.0, %v334
    %v336 = vpop.f32.mrf.mxu0
    %337 = vmatprep.mubr.f32.mxu0 0.0
    %338 = vmatmul.mubr.f32.gmra.mxu0 %v132
    %v339 = vpop.f32.mrf.mxu0
    %v340 = vadd.f32 0.0, %v339
    %v341 = vpop.f32.mrf.mxu0
    %342 = vmatprep.mubr.f32.mxu0 0.0
    %343 = vmatmul.mubr.f32.gmra.mxu0 %v135
    %v344 = vpop.f32.mrf.mxu0
    %v345 = vadd.f32 0.0, %v344
    %v346 = vpop.f32.mrf.mxu0
    %347 = vmatprep.mubr.f32.mxu0 0.0
    %348 = vmatmul.mubr.f32.gmra.mxu0 %v138
    %v349 = vpop.f32.mrf.mxu0
    %v350 = vadd.f32 0.0, %v349
    %v351 = vpop.f32.mrf.mxu0
    %352 = vmatprep.mubr.f32.mxu0 0.0
    %353 = vmatmul.mubr.f32.gmra.mxu0 %v141
    %v354 = vpop.f32.mrf.mxu0
    %v355 = vadd.f32 0.0, %v354
    %v356 = vpop.f32.mrf.mxu0
    %357 = vmatprep.mubr.f32.mxu0 0.0
    %358 = vmatmul.mubr.f32.gmra.mxu0 %v144
    %v359 = vpop.f32.mrf.mxu0
    %v360 = vadd.f32 0.0, %v359
    %v361 = vpop.f32.mrf.mxu0
    %362 = vmatprep.mubr.f32.mxu0 0.0
    %363 = vmatmul.mubr.f32.gmra.mxu0 %v147
    %v364 = vpop.f32.mrf.mxu0
    %v365 = vadd.f32 0.0, %v364
    %v366 = vpop.f32.mrf.mxu0
    %367 = vmatprep.mubr.f32.mxu0 0.0
    %368 = vmatmul.mubr.f32.gmra.mxu0 %v150
    %v369 = vpop.f32.mrf.mxu0
    %v370 = vadd.f32 0.0, %v369
    %v371 = vpop.f32.mrf.mxu0
    %372 = vmatprep.mubr.f32.mxu0 0.0
    %373 = vmatmul.mubr.f32.gmra.mxu0 %v153
    %v374 = vpop.f32.mrf.mxu0
    %v375 = vadd.f32 0.0, %v374
    %v376 = vpop.f32.mrf.mxu0
    %377 = vmatprep.mubr.f32.mxu0 0.0
    %378 = vmatmul.mubr.f32.gmra.mxu0 %v156
    %v379 = vpop.f32.mrf.mxu0
    %v380 = vadd.f32 0.0, %v379
    %v381 = vpop.f32.mrf.mxu0
    %382 = vdwg.mxu0
    %v383 = vmax.f32 %v225, 0.0
    %v384 = vmax.f32 %v230, 0.0
    %v385 = vmax.f32 %v235, 0.0
    %v386 = vmax.f32 %v240, 0.0
    %v387 = vmax.f32 %v245, 0.0
    %v388 = vmax.f32 %v250, 0.0
    %v389 = vmax.f32 %v255, 0.0
    %v390 = vmax.f32 %v260, 0.0
    %v391 = vmax.f32 %v265, 0.0
    %v392 = vmax.f32 %v270, 0.0
    %v393 = vmax.f32 %v275, 0.0
    %v394 = vmax.f32 %v280, 0.0
    %v395 = vmax.f32 %v285, 0.0
    %v396 = vmax.f32 %v290, 0.0
    %v397 = vmax.f32 %v295, 0.0
    %v398 = vmax.f32 %v300, 0.0
    %v399 = vmax.f32 %v305, 0.0
    %v400 = vmax.f32 %v310, 0.0
    %v401 = vmax.f32 %v315, 0.0
    %v402 = vmax.f32 %v320, 0.0
    %v403 = vmax.f32 %v325, 0.0
    %v404 = vmax.f32 %v330, 0.0
    %v405 = vmax.f32 %v335, 0.0
    %v406 = vmax.f32 %v340, 0.0
    %v407 = vmax.f32 %v345, 0.0
    %v408 = vmax.f32 %v350, 0.0
    %v409 = vmax.f32 %v355, 0.0
    %v410 = vmax.f32 %v360, 0.0
    %v411 = vmax.f32 %v365, 0.0
    %v412 = vmax.f32 %v370, 0.0
    %v413 = vmax.f32 %v375, 0.0
    %v414 = vmax.f32 %v380, 0.0
    %v415 = vmin.f32 %v383, 1.0
    %v416 = vmin.f32 %v384, 1.0
    %v417 = vmin.f32 %v385, 1.0
    %v418 = vmin.f32 %v386, 1.0
    %v419 = vmin.f32 %v387, 1.0
    %v420 = vmin.f32 %v388, 1.0
    %v421 = vmin.f32 %v389, 1.0
    %v422 = vmin.f32 %v390, 1.0
    %v423 = vmin.f32 %v391, 1.0
    %v424 = vmin.f32 %v392, 1.0
    %v425 = vmin.f32 %v393, 1.0
    %v426 = vmin.f32 %v394, 1.0
    %v427 = vmin.f32 %v395, 1.0
    %v428 = vmin.f32 %v396, 1.0
    %v429 = vmin.f32 %v397, 1.0
    %v430 = vmin.f32 %v398, 1.0
    %v431 = vmin.f32 %v399, 1.0
    %v432 = vmin.f32 %v400, 1.0
    %v433 = vmin.f32 %v401, 1.0
    %v434 = vmin.f32 %v402, 1.0
    %v435 = vmin.f32 %v403, 1.0
    %v436 = vmin.f32 %v404, 1.0
    %v437 = vmin.f32 %v405, 1.0
    %v438 = vmin.f32 %v406, 1.0
    %v439 = vmin.f32 %v407, 1.0
    %v440 = vmin.f32 %v408, 1.0
    %v441 = vmin.f32 %v409, 1.0
    %v442 = vmin.f32 %v410, 1.0
    %v443 = vmin.f32 %v411, 1.0
    %v444 = vmin.f32 %v412, 1.0
    %v445 = vmin.f32 %v413, 1.0
    %v446 = vmin.f32 %v414, 1.0
    %v447 = vld [vmem:[%s1] sm:$0xff]
    %v448 = vld [vmem:[%s1 + $0x8] sm:$0xff]
    %v449 = vld [vmem:[%s1 + $0x10] sm:$0xff]
    %v450 = vld [vmem:[%s1 + $0x18] sm:$0xff]
    %v451 = vld [vmem:[%s1 + $0x20] sm:$0xff]
    %v452 = vld [vmem:[%s1 + $0x28] sm:$0xff]
    %v453 = vld [vmem:[%s1 + $0x30] sm:$0xff]
    %v454 = vld [vmem:[%s1 + $0x38] sm:$0xff]
    %v455 = vld [vmem:[%s1 + $0x40] sm:$0xff]
    %v456 = vld [vmem:[%s1 + $0x48] sm:$0xff]
    %v457 = vld [vmem:[%s1 + $0x50] sm:$0xff]
    %v458 = vld [vmem:[%s1 + $0x58] sm:$0xff]
    %v459 = vld [vmem:[%s1 + $0x60] sm:$0xff]
    %v460 = vld [vmem:[%s1 + $0x68] sm:$0xff]
    %v461 = vld [vmem:[%s1 + $0x70] sm:$0xff]
    %v462 = vld [vmem:[%s1 + $0x78] sm:$0xff]
    %v463 = vld [vmem:[%s1 + $0x80] sm:$0xff]
    %v464 = vld [vmem:[%s1 + $0x88] sm:$0xff]
    %v465 = vld [vmem:[%s1 + $0x90] sm:$0xff]
    %v466 = vld [vmem:[%s1 + $0x98] sm:$0xff]
    %v467 = vld [vmem:[%s1 + $0xa0] sm:$0xff]
    %v468 = vld [vmem:[%s1 + $0xa8] sm:$0xff]
    %v469 = vld [vmem:[%s1 + $0xb0] sm:$0xff]
    %v470 = vld [vmem:[%s1 + $0xb8] sm:$0xff]
    %v471 = vld [vmem:[%s1 + $0xc0] sm:$0xff]
    %v472 = vld [vmem:[%s1 + $0xc8] sm:$0xff]
    %v473 = vld [vmem:[%s1 + $0xd0] sm:$0xff]
    %v474 = vld [vmem:[%s1 + $0xd8] sm:$0xff]
    %v475 = vld [vmem:[%s1 + $0xe0] sm:$0xff]
    %v476 = vld [vmem:[%s1 + $0xe8] sm:$0xff]
    %v477 = vld [vmem:[%s1 + $0xf0] sm:$0xff]
    %v478 = vld [vmem:[%s1 + $0xf8] sm:$0xff]
    %v479 = vmul.f32 %v415, %v447
    %v480 = vmul.f32 %v416, %v448
    %v481 = vmul.f32 %v417, %v449
    %v482 = vmul.f32 %v418, %v450
    %v483 = vmul.f32 %v419, %v451
    %v484 = vmul.f32 %v420, %v452
    %v485 = vmul.f32 %v421, %v453
    %v486 = vmul.f32 %v422, %v454
    %v487 = vmul.f32 %v423, %v455
    %v488 = vmul.f32 %v424, %v456
    %v489 = vmul.f32 %v425, %v457
    %v490 = vmul.f32 %v426, %v458
    %v491 = vmul.f32 %v427, %v459
    %v492 = vmul.f32 %v428, %v460
    %v493 = vmul.f32 %v429, %v461
    %v494 = vmul.f32 %v430, %v462
    %v495 = vmul.f32 %v431, %v463
    %v496 = vmul.f32 %v432, %v464
    %v497 = vmul.f32 %v433, %v465
    %v498 = vmul.f32 %v434, %v466
    %v499 = vmul.f32 %v435, %v467
    %v500 = vmul.f32 %v436, %v468
    %v501 = vmul.f32 %v437, %v469
    %v502 = vmul.f32 %v438, %v470
    %v503 = vmul.f32 %v439, %v471
    %v504 = vmul.f32 %v440, %v472
    %v505 = vmul.f32 %v441, %v473
    %v506 = vmul.f32 %v442, %v474
    %v507 = vmul.f32 %v443, %v475
    %v508 = vmul.f32 %v444, %v476
    %v509 = vmul.f32 %v445, %v477
    %v510 = vmul.f32 %v446, %v478
    %v511 = vpack.c.bf16 %v480, %v479
    %v512 = vpack.c.bf16 %v482, %v481
    %v513 = vpack.c.bf16 %v484, %v483
    %v514 = vpack.c.bf16 %v486, %v485
    %v515 = vpack.c.bf16 %v488, %v487
    %v516 = vpack.c.bf16 %v490, %v489
    %v517 = vpack.c.bf16 %v492, %v491
    %v518 = vpack.c.bf16 %v494, %v493
    %v519 = vpack.c.bf16 %v496, %v495
    %v520 = vpack.c.bf16 %v498, %v497
    %v521 = vpack.c.bf16 %v500, %v499
    %v522 = vpack.c.bf16 %v502, %v501
    %v523 = vpack.c.bf16 %v504, %v503
    %v524 = vpack.c.bf16 %v506, %v505
    %v525 = vpack.c.bf16 %v508, %v507
    %v526 = vpack.c.bf16 %v510, %v509
    %v527 = vld [vmem:[%s4] sm:$0xf]
    %v528 = vld [vmem:[%s4 + $0x4] sm:$0xf]
    %v529 = vld [vmem:[%s4 + $0x8] sm:$0xf]
    %v530 = vld [vmem:[%s4 + $0xc] sm:$0xf]
    %v531 = vld [vmem:[%s4 + $0x10] sm:$0xf]
    %v532 = vld [vmem:[%s4 + $0x14] sm:$0xf]
    %v533 = vld [vmem:[%s4 + $0x18] sm:$0xf]
    %v534 = vld [vmem:[%s4 + $0x1c] sm:$0xf]
    %v543 = vunpack.c.l.b16 %v527
    %v544 = vunpack.c.l.b16 %v528
    %v545 = vunpack.c.l.b16 %v529
    %v546 = vunpack.c.l.b16 %v530
    %v547 = vunpack.c.l.b16 %v531
    %v548 = vunpack.c.l.b16 %v532
    %v549 = vunpack.c.l.b16 %v533
    %v550 = vunpack.c.l.b16 %v534
    %v551 = vpack.c.b16 %v544, %v543
    %v552 = vpack.c.b16 %v546, %v545
    %v553 = vpack.c.b16 %v548, %v547
    %v554 = vpack.c.b16 %v550, %v549
    %vm559 = vcmask 523264
    %v561 = vsel %vm559, %v511, 0
    %v564 = vsel %vm559, %v512, 0
    %v567 = vsel %vm559, %v513, 0
    %v570 = vsel %vm559, %v514, 0
    %v573 = vsel %vm559, %v515, 0
    %v576 = vsel %vm559, %v516, 0
    %v579 = vsel %vm559, %v517, 0
    %v582 = vsel %vm559, %v518, 0
    %v585 = vsel %vm559, %v519, 0
    %v588 = vsel %vm559, %v520, 0
    %v591 = vsel %vm559, %v521, 0
    %v594 = vsel %vm559, %v522, 0
    %v597 = vsel %vm559, %v523, 0
    %v600 = vsel %vm559, %v524, 0
    %v603 = vsel %vm559, %v525, 0
    %v606 = vsel %vm559, %v526, 0
    %608 = vmatprep.subr.bf16.mxu0 0
    %609 = vmatpush1.bf16.msra.mxu0 0
    %610 = vmatprep.subr.bf16.mxu0 0
    %611 = vmatpush1.bf16.msra.mxu0 0
    %612 = vmatprep.subr.bf16.mxu0 0
    %613 = vmatpush1.bf16.msra.mxu0 0
    %614 = vmatprep.subr.bf16.mxu0 0
    %615 = vmatpush1.bf16.msra.mxu0 0
    %616 = vmatprep.subr.bf16.mxu0 0
    %617 = vmatpush1.bf16.msra.mxu0 %v554
    %618 = vmatprep.subr.bf16.mxu0 0
    %619 = vmatpush1.bf16.msra.mxu0 %v553
    %620 = vmatprep.subr.bf16.mxu0 0
    %621 = vmatpush1.bf16.msra.mxu0 %v552
    %622 = vmatprep.subr.bf16.mxu0 0
    %623 = vmatpush1.bf16.msra.mxu0 %v551
    %624 = vmatprep.subr.bf16.mxu0 0
    %625 = vmatpush2.bf16.msra.mxu0 0
    %626 = vmatprep.subr.bf16.mxu0 0
    %627 = vmatpush2.bf16.msra.mxu0 0
    %628 = vmatprep.subr.bf16.mxu0 0
    %629 = vmatpush2.bf16.msra.mxu0 0
    %630 = vmatprep.subr.bf16.mxu0 0
    %631 = vmatpush2.bf16.msra.mxu0 0
    %632 = vmatprep.subr.bf16.mxu0 0
    %633 = vmatpush2.bf16.msra.mxu0 0
    %634 = vmatprep.subr.bf16.mxu0 0
    %635 = vmatpush2.bf16.msra.mxu0 0
    %636 = vmatprep.subr.bf16.mxu0 0
    %637 = vmatpush2.bf16.msra.mxu0 0
    %638 = vmatprep.subr.bf16.mxu0 0
    %639 = vmatpush2.bf16.msra.mxu0 0
    %640 = vmatprep.mubr.bf16.mxu0 0
    %641 = vmatmul.mubr.bf16.gmra.mxu0 %v561
    %v642 = vpop.f32.mrf.mxu0
    %v643 = vadd.f32 0.0, %v642
    %v644 = vpop.f32.mrf.mxu0
    %v645 = vpop.f32.mrf.mxu0
    %v646 = vadd.f32 0.0, %v645
    %v647 = vpop.f32.mrf.mxu0
    %648 = vmatprep.mubr.bf16.mxu0 0
    %649 = vmatmul.mubr.bf16.gmra.mxu0 %v564
    %v650 = vpop.f32.mrf.mxu0
    %v651 = vadd.f32 0.0, %v650
    %v652 = vpop.f32.mrf.mxu0
    %v653 = vpop.f32.mrf.mxu0
    %v654 = vadd.f32 0.0, %v653
    %v655 = vpop.f32.mrf.mxu0
    %656 = vmatprep.mubr.bf16.mxu0 0
    %657 = vmatmul.mubr.bf16.gmra.mxu0 %v567
    %v658 = vpop.f32.mrf.mxu0
    %v659 = vadd.f32 0.0, %v658
    %v660 = vpop.f32.mrf.mxu0
    %v661 = vpop.f32.mrf.mxu0
    %v662 = vadd.f32 0.0, %v661
    %v663 = vpop.f32.mrf.mxu0
    %664 = vmatprep.mubr.bf16.mxu0 0
    %665 = vmatmul.mubr.bf16.gmra.mxu0 %v570
    %v666 = vpop.f32.mrf.mxu0
    %v667 = vadd.f32 0.0, %v666
    %v668 = vpop.f32.mrf.mxu0
    %v669 = vpop.f32.mrf.mxu0
    %v670 = vadd.f32 0.0, %v669
    %v671 = vpop.f32.mrf.mxu0
    %672 = vmatprep.mubr.bf16.mxu0 0
    %673 = vmatmul.mubr.bf16.gmra.mxu0 %v573
    %v674 = vpop.f32.mrf.mxu0
    %v675 = vadd.f32 0.0, %v674
    %v676 = vpop.f32.mrf.mxu0
    %v677 = vpop.f32.mrf.mxu0
    %v678 = vadd.f32 0.0, %v677
    %v679 = vpop.f32.mrf.mxu0
    %680 = vmatprep.mubr.bf16.mxu0 0
    %681 = vmatmul.mubr.bf16.gmra.mxu0 %v576
    %v682 = vpop.f32.mrf.mxu0
    %v683 = vadd.f32 0.0, %v682
    %v684 = vpop.f32.mrf.mxu0
    %v685 = vpop.f32.mrf.mxu0
    %v686 = vadd.f32 0.0, %v685
    %v687 = vpop.f32.mrf.mxu0
    %688 = vmatprep.mubr.bf16.mxu0 0
    %689 = vmatmul.mubr.bf16.gmra.mxu0 %v579
    %v690 = vpop.f32.mrf.mxu0
    %v691 = vadd.f32 0.0, %v690
    %v692 = vpop.f32.mrf.mxu0
    %v693 = vpop.f32.mrf.mxu0
    %v694 = vadd.f32 0.0, %v693
    %v695 = vpop.f32.mrf.mxu0
    %696 = vmatprep.mubr.bf16.mxu0 0
    %697 = vmatmul.mubr.bf16.gmra.mxu0 %v582
    %v698 = vpop.f32.mrf.mxu0
    %v699 = vadd.f32 0.0, %v698
    %v700 = vpop.f32.mrf.mxu0
    %v701 = vpop.f32.mrf.mxu0
    %v702 = vadd.f32 0.0, %v701
    %v703 = vpop.f32.mrf.mxu0
    %704 = vmatprep.mubr.bf16.mxu0 0
    %705 = vmatmul.mubr.bf16.gmra.mxu0 %v585
    %v706 = vpop.f32.mrf.mxu0
    %v707 = vadd.f32 0.0, %v706
    %v708 = vpop.f32.mrf.mxu0
    %v709 = vpop.f32.mrf.mxu0
    %v710 = vadd.f32 0.0, %v709
    %v711 = vpop.f32.mrf.mxu0
    %712 = vmatprep.mubr.bf16.mxu0 0
    %713 = vmatmul.mubr.bf16.gmra.mxu0 %v588
    %v714 = vpop.f32.mrf.mxu0
    %v715 = vadd.f32 0.0, %v714
    %v716 = vpop.f32.mrf.mxu0
    %v717 = vpop.f32.mrf.mxu0
    %v718 = vadd.f32 0.0, %v717
    %v719 = vpop.f32.mrf.mxu0
    %720 = vmatprep.mubr.bf16.mxu0 0
    %721 = vmatmul.mubr.bf16.gmra.mxu0 %v591
    %v722 = vpop.f32.mrf.mxu0
    %v723 = vadd.f32 0.0, %v722
    %v724 = vpop.f32.mrf.mxu0
    %v725 = vpop.f32.mrf.mxu0
    %v726 = vadd.f32 0.0, %v725
    %v727 = vpop.f32.mrf.mxu0
    %728 = vmatprep.mubr.bf16.mxu0 0
    %729 = vmatmul.mubr.bf16.gmra.mxu0 %v594
    %v730 = vpop.f32.mrf.mxu0
    %v731 = vadd.f32 0.0, %v730
    %v732 = vpop.f32.mrf.mxu0
    %v733 = vpop.f32.mrf.mxu0
    %v734 = vadd.f32 0.0, %v733
    %v735 = vpop.f32.mrf.mxu0
    %736 = vmatprep.mubr.bf16.mxu0 0
    %737 = vmatmul.mubr.bf16.gmra.mxu0 %v597
    %v738 = vpop.f32.mrf.mxu0
    %v739 = vadd.f32 0.0, %v738
    %v740 = vpop.f32.mrf.mxu0
    %v741 = vpop.f32.mrf.mxu0
    %v742 = vadd.f32 0.0, %v741
    %v743 = vpop.f32.mrf.mxu0
    %744 = vmatprep.mubr.bf16.mxu0 0
    %745 = vmatmul.mubr.bf16.gmra.mxu0 %v600
    %v746 = vpop.f32.mrf.mxu0
    %v747 = vadd.f32 0.0, %v746
    %v748 = vpop.f32.mrf.mxu0
    %v749 = vpop.f32.mrf.mxu0
    %v750 = vadd.f32 0.0, %v749
    %v751 = vpop.f32.mrf.mxu0
    %752 = vmatprep.mubr.bf16.mxu0 0
    %753 = vmatmul.mubr.bf16.gmra.mxu0 %v603
    %v754 = vpop.f32.mrf.mxu0
    %v755 = vadd.f32 0.0, %v754
    %v756 = vpop.f32.mrf.mxu0
    %v757 = vpop.f32.mrf.mxu0
    %v758 = vadd.f32 0.0, %v757
    %v759 = vpop.f32.mrf.mxu0
    %760 = vmatprep.mubr.bf16.mxu0 0
    %761 = vmatmul.mubr.bf16.gmra.mxu0 %v606
    %v762 = vpop.f32.mrf.mxu0
    %v763 = vadd.f32 0.0, %v762
    %v764 = vpop.f32.mrf.mxu0
    %v765 = vpop.f32.mrf.mxu0
    %v766 = vadd.f32 0.0, %v765
    %v767 = vpop.f32.mrf.mxu0
    %768 = vdwg.mxu0
    %v769 = vld [vmem:[%s2] sm:$0xff]
    %v770 = vld [vmem:[%s2 + $0x8] sm:$0xff]
    %v771 = vld [vmem:[%s2 + $0x10] sm:$0xff]
    %v772 = vld [vmem:[%s2 + $0x18] sm:$0xff]
    %v773 = vld [vmem:[%s2 + $0x20] sm:$0xff]
    %v774 = vld [vmem:[%s2 + $0x28] sm:$0xff]
    %v775 = vld [vmem:[%s2 + $0x30] sm:$0xff]
    %v776 = vld [vmem:[%s2 + $0x38] sm:$0xff]
    %v777 = vld [vmem:[%s2 + $0x40] sm:$0xff]
    %v778 = vld [vmem:[%s2 + $0x48] sm:$0xff]
    %v779 = vld [vmem:[%s2 + $0x50] sm:$0xff]
    %v780 = vld [vmem:[%s2 + $0x58] sm:$0xff]
    %v781 = vld [vmem:[%s2 + $0x60] sm:$0xff]
    %v782 = vld [vmem:[%s2 + $0x68] sm:$0xff]
    %v783 = vld [vmem:[%s2 + $0x70] sm:$0xff]
    %v784 = vld [vmem:[%s2 + $0x78] sm:$0xff]
    %v785 = vld [vmem:[%s2 + $0x80] sm:$0xff]
    %v786 = vld [vmem:[%s2 + $0x88] sm:$0xff]
    %v787 = vld [vmem:[%s2 + $0x90] sm:$0xff]
    %v788 = vld [vmem:[%s2 + $0x98] sm:$0xff]
    %v789 = vld [vmem:[%s2 + $0xa0] sm:$0xff]
    %v790 = vld [vmem:[%s2 + $0xa8] sm:$0xff]
    %v791 = vld [vmem:[%s2 + $0xb0] sm:$0xff]
    %v792 = vld [vmem:[%s2 + $0xb8] sm:$0xff]
    %v793 = vld [vmem:[%s2 + $0xc0] sm:$0xff]
    %v794 = vld [vmem:[%s2 + $0xc8] sm:$0xff]
    %v795 = vld [vmem:[%s2 + $0xd0] sm:$0xff]
    %v796 = vld [vmem:[%s2 + $0xd8] sm:$0xff]
    %v797 = vld [vmem:[%s2 + $0xe0] sm:$0xff]
    %v798 = vld [vmem:[%s2 + $0xe8] sm:$0xff]
    %v799 = vld [vmem:[%s2 + $0xf0] sm:$0xff]
    %v800 = vld [vmem:[%s2 + $0xf8] sm:$0xff]
    %v801 = vmax.f32 %v769, 0.0
    %v802 = vmax.f32 %v770, 0.0
    %v803 = vmax.f32 %v771, 0.0
    %v804 = vmax.f32 %v772, 0.0
    %v805 = vmax.f32 %v773, 0.0
    %v806 = vmax.f32 %v774, 0.0
    %v807 = vmax.f32 %v775, 0.0
    %v808 = vmax.f32 %v776, 0.0
    %v809 = vmax.f32 %v777, 0.0
    %v810 = vmax.f32 %v778, 0.0
    %v811 = vmax.f32 %v779, 0.0
    %v812 = vmax.f32 %v780, 0.0
    %v813 = vmax.f32 %v781, 0.0
    %v814 = vmax.f32 %v782, 0.0
    %v815 = vmax.f32 %v783, 0.0
    %v816 = vmax.f32 %v784, 0.0
    %v817 = vmax.f32 %v785, 0.0
    %v818 = vmax.f32 %v786, 0.0
    %v819 = vmax.f32 %v787, 0.0
    %v820 = vmax.f32 %v788, 0.0
    %v821 = vmax.f32 %v789, 0.0
    %v822 = vmax.f32 %v790, 0.0
    %v823 = vmax.f32 %v791, 0.0
    %v824 = vmax.f32 %v792, 0.0
    %v825 = vmax.f32 %v793, 0.0
    %v826 = vmax.f32 %v794, 0.0
    %v827 = vmax.f32 %v795, 0.0
    %v828 = vmax.f32 %v796, 0.0
    %v829 = vmax.f32 %v797, 0.0
    %v830 = vmax.f32 %v798, 0.0
    %v831 = vmax.f32 %v799, 0.0
    %v832 = vmax.f32 %v800, 0.0
    %v833 = vmin.f32 %v801, 1.0
    %v834 = vmin.f32 %v802, 1.0
    %v835 = vmin.f32 %v803, 1.0
    %v836 = vmin.f32 %v804, 1.0
    %v837 = vmin.f32 %v805, 1.0
    %v838 = vmin.f32 %v806, 1.0
    %v839 = vmin.f32 %v807, 1.0
    %v840 = vmin.f32 %v808, 1.0
    %v841 = vmin.f32 %v809, 1.0
    %v842 = vmin.f32 %v810, 1.0
    %v843 = vmin.f32 %v811, 1.0
    %v844 = vmin.f32 %v812, 1.0
    %v845 = vmin.f32 %v813, 1.0
    %v846 = vmin.f32 %v814, 1.0
    %v847 = vmin.f32 %v815, 1.0
    %v848 = vmin.f32 %v816, 1.0
    %v849 = vmin.f32 %v817, 1.0
    %v850 = vmin.f32 %v818, 1.0
    %v851 = vmin.f32 %v819, 1.0
    %v852 = vmin.f32 %v820, 1.0
    %v853 = vmin.f32 %v821, 1.0
    %v854 = vmin.f32 %v822, 1.0
    %v855 = vmin.f32 %v823, 1.0
    %v856 = vmin.f32 %v824, 1.0
    %v857 = vmin.f32 %v825, 1.0
    %v858 = vmin.f32 %v826, 1.0
    %v859 = vmin.f32 %v827, 1.0
    %v860 = vmin.f32 %v828, 1.0
    %v861 = vmin.f32 %v829, 1.0
    %v862 = vmin.f32 %v830, 1.0
    %v863 = vmin.f32 %v831, 1.0
    %v864 = vmin.f32 %v832, 1.0
    %v865 = vmul.f32 %v833, %v643
    %v866 = vmul.f32 %v834, %v646
    %v867 = vmul.f32 %v835, %v651
    %v868 = vmul.f32 %v836, %v654
    %v869 = vmul.f32 %v837, %v659
    %v870 = vmul.f32 %v838, %v662
    %v871 = vmul.f32 %v839, %v667
    %v872 = vmul.f32 %v840, %v670
    %v873 = vmul.f32 %v841, %v675
    %v874 = vmul.f32 %v842, %v678
    %v875 = vmul.f32 %v843, %v683
    %v876 = vmul.f32 %v844, %v686
    %v877 = vmul.f32 %v845, %v691
    %v878 = vmul.f32 %v846, %v694
    %v879 = vmul.f32 %v847, %v699
    %v880 = vmul.f32 %v848, %v702
    %v881 = vmul.f32 %v849, %v707
    %v882 = vmul.f32 %v850, %v710
    %v883 = vmul.f32 %v851, %v715
    %v884 = vmul.f32 %v852, %v718
    %v885 = vmul.f32 %v853, %v723
    %v886 = vmul.f32 %v854, %v726
    %v887 = vmul.f32 %v855, %v731
    %v888 = vmul.f32 %v856, %v734
    %v889 = vmul.f32 %v857, %v739
    %v890 = vmul.f32 %v858, %v742
    %v891 = vmul.f32 %v859, %v747
    %v892 = vmul.f32 %v860, %v750
    %v893 = vmul.f32 %v861, %v755
    %v894 = vmul.f32 %v862, %v758
    %v895 = vmul.f32 %v863, %v763
    %v896 = vmul.f32 %v864, %v766
    %v897 = vpack.c.bf16 %v866, %v865
    %v898 = vpack.c.bf16 %v868, %v867
    %v899 = vpack.c.bf16 %v870, %v869
    %v900 = vpack.c.bf16 %v872, %v871
    %v901 = vpack.c.bf16 %v874, %v873
    %v902 = vpack.c.bf16 %v876, %v875
    %v903 = vpack.c.bf16 %v878, %v877
    %v904 = vpack.c.bf16 %v880, %v879
    %v905 = vpack.c.bf16 %v882, %v881
    %v906 = vpack.c.bf16 %v884, %v883
    %v907 = vpack.c.bf16 %v886, %v885
    %v908 = vpack.c.bf16 %v888, %v887
    %v909 = vpack.c.bf16 %v890, %v889
    %v910 = vpack.c.bf16 %v892, %v891
    %v911 = vpack.c.bf16 %v894, %v893
    %v912 = vpack.c.bf16 %v896, %v895
    %v913 = vld [vmem:[%s5] sm:$0xf]
    %v914 = vld [vmem:[%s5 + $0x4] sm:$0xf]
    %v915 = vld [vmem:[%s5 + $0x8] sm:$0xf]
    %v916 = vld [vmem:[%s5 + $0xc] sm:$0xf]
    %v917 = vld [vmem:[%s5 + $0x10] sm:$0xf]
    %v918 = vld [vmem:[%s5 + $0x14] sm:$0xf]
    %v919 = vld [vmem:[%s5 + $0x18] sm:$0xf]
    %v920 = vld [vmem:[%s5 + $0x1c] sm:$0xf]
    %v921 = vld [vmem:[%s5 + $0x20] sm:$0xf]
    %v922 = vld [vmem:[%s5 + $0x24] sm:$0xf]
    %v923 = vld [vmem:[%s5 + $0x28] sm:$0xf]
    %v924 = vld [vmem:[%s5 + $0x2c] sm:$0xf]
    %v925 = vld [vmem:[%s5 + $0x30] sm:$0xf]
    %v926 = vld [vmem:[%s5 + $0x34] sm:$0xf]
    %v927 = vld [vmem:[%s5 + $0x38] sm:$0xf]
    %v928 = vld [vmem:[%s5 + $0x3c] sm:$0xf]
    %v945 = vunpack.c.l.b16 %v913
    %v946 = vunpack.c.l.b16 %v914
    %v947 = vunpack.c.l.b16 %v915
    %v948 = vunpack.c.l.b16 %v916
    %v949 = vunpack.c.l.b16 %v917
    %v950 = vunpack.c.l.b16 %v918
    %v951 = vunpack.c.l.b16 %v919
    %v952 = vunpack.c.l.b16 %v920
    %v953 = vunpack.c.l.b16 %v921
    %v954 = vunpack.c.l.b16 %v922
    %v955 = vunpack.c.l.b16 %v923
    %v956 = vunpack.c.l.b16 %v924
    %v957 = vunpack.c.l.b16 %v925
    %v958 = vunpack.c.l.b16 %v926
    %v959 = vunpack.c.l.b16 %v927
    %v960 = vunpack.c.l.b16 %v928
    %v961 = vpack.c.b16 %v946, %v945
    %v962 = vpack.c.b16 %v948, %v947
    %v963 = vpack.c.b16 %v950, %v949
    %v964 = vpack.c.b16 %v952, %v951
    %v965 = vpack.c.b16 %v954, %v953
    %v966 = vpack.c.b16 %v956, %v955
    %v967 = vpack.c.b16 %v958, %v957
    %v968 = vpack.c.b16 %v960, %v959
    %977 = vmatprep.subr.bf16.mxu0 0
    %978 = vmatpush1.bf16.msra.mxu0 %v968
    %979 = vmatprep.subr.bf16.mxu0 0
    %980 = vmatpush1.bf16.msra.mxu0 %v967
    %981 = vmatprep.subr.bf16.mxu0 0
    %982 = vmatpush1.bf16.msra.mxu0 %v966
    %983 = vmatprep.subr.bf16.mxu0 0
    %984 = vmatpush1.bf16.msra.mxu0 %v965
    %985 = vmatprep.subr.bf16.mxu0 0
    %986 = vmatpush1.bf16.msra.mxu0 %v964
    %987 = vmatprep.subr.bf16.mxu0 0
    %988 = vmatpush1.bf16.msra.mxu0 %v963
    %989 = vmatprep.subr.bf16.mxu0 0
    %990 = vmatpush1.bf16.msra.mxu0 %v962
    %991 = vmatprep.subr.bf16.mxu0 0
    %992 = vmatpush1.bf16.msra.mxu0 %v961
    %993 = vmatprep.subr.bf16.mxu0 0
    %994 = vmatpush2.bf16.msra.mxu0 0
    %995 = vmatprep.subr.bf16.mxu0 0
    %996 = vmatpush2.bf16.msra.mxu0 0
    %997 = vmatprep.subr.bf16.mxu0 0
    %998 = vmatpush2.bf16.msra.mxu0 0
    %999 = vmatprep.subr.bf16.mxu0 0
    %1000 = vmatpush2.bf16.msra.mxu0 0
    %1001 = vmatprep.subr.bf16.mxu0 0
    %1002 = vmatpush2.bf16.msra.mxu0 0
    %1003 = vmatprep.subr.bf16.mxu0 0
    %1004 = vmatpush2.bf16.msra.mxu0 0
    %1005 = vmatprep.subr.bf16.mxu0 0
    %1006 = vmatpush2.bf16.msra.mxu0 0
    %1007 = vmatprep.subr.bf16.mxu0 0
    %1008 = vmatpush2.bf16.msra.mxu0 0
    %1009 = vmatprep.mubr.bf16.mxu0 0
    %1010 = vmatmul.mubr.bf16.gmra.mxu0 %v897
    %v1011 = vpop.f32.mrf.mxu0
    %v1012 = vadd.f32 0.0, %v1011
    %v1013 = vpop.f32.mrf.mxu0
    %v1014 = vpop.f32.mrf.mxu0
    %v1015 = vadd.f32 0.0, %v1014
    %v1016 = vpop.f32.mrf.mxu0
    %1017 = vmatprep.mubr.bf16.mxu0 0
    %1018 = vmatmul.mubr.bf16.gmra.mxu0 %v898
    %v1019 = vpop.f32.mrf.mxu0
    %v1020 = vadd.f32 0.0, %v1019
    %v1021 = vpop.f32.mrf.mxu0
    %v1022 = vpop.f32.mrf.mxu0
    %v1023 = vadd.f32 0.0, %v1022
    %v1024 = vpop.f32.mrf.mxu0
    %1025 = vmatprep.mubr.bf16.mxu0 0
    %1026 = vmatmul.mubr.bf16.gmra.mxu0 %v899
    %v1027 = vpop.f32.mrf.mxu0
    %v1028 = vadd.f32 0.0, %v1027
    %v1029 = vpop.f32.mrf.mxu0
    %v1030 = vpop.f32.mrf.mxu0
    %v1031 = vadd.f32 0.0, %v1030
    %v1032 = vpop.f32.mrf.mxu0
    %1033 = vmatprep.mubr.bf16.mxu0 0
    %1034 = vmatmul.mubr.bf16.gmra.mxu0 %v900
    %v1035 = vpop.f32.mrf.mxu0
    %v1036 = vadd.f32 0.0, %v1035
    %v1037 = vpop.f32.mrf.mxu0
    %v1038 = vpop.f32.mrf.mxu0
    %v1039 = vadd.f32 0.0, %v1038
    %v1040 = vpop.f32.mrf.mxu0
    %1041 = vmatprep.mubr.bf16.mxu0 0
    %1042 = vmatmul.mubr.bf16.gmra.mxu0 %v901
    %v1043 = vpop.f32.mrf.mxu0
    %v1044 = vadd.f32 0.0, %v1043
    %v1045 = vpop.f32.mrf.mxu0
    %v1046 = vpop.f32.mrf.mxu0
    %v1047 = vadd.f32 0.0, %v1046
    %v1048 = vpop.f32.mrf.mxu0
    %1049 = vmatprep.mubr.bf16.mxu0 0
    %1050 = vmatmul.mubr.bf16.gmra.mxu0 %v902
    %v1051 = vpop.f32.mrf.mxu0
    %v1052 = vadd.f32 0.0, %v1051
    %v1053 = vpop.f32.mrf.mxu0
    %v1054 = vpop.f32.mrf.mxu0
    %v1055 = vadd.f32 0.0, %v1054
    %v1056 = vpop.f32.mrf.mxu0
    %1057 = vmatprep.mubr.bf16.mxu0 0
    %1058 = vmatmul.mubr.bf16.gmra.mxu0 %v903
    %v1059 = vpop.f32.mrf.mxu0
    %v1060 = vadd.f32 0.0, %v1059
    %v1061 = vpop.f32.mrf.mxu0
    %v1062 = vpop.f32.mrf.mxu0
    %v1063 = vadd.f32 0.0, %v1062
    %v1064 = vpop.f32.mrf.mxu0
    %1065 = vmatprep.mubr.bf16.mxu0 0
    %1066 = vmatmul.mubr.bf16.gmra.mxu0 %v904
    %v1067 = vpop.f32.mrf.mxu0
    %v1068 = vadd.f32 0.0, %v1067
    %v1069 = vpop.f32.mrf.mxu0
    %v1070 = vpop.f32.mrf.mxu0
    %v1071 = vadd.f32 0.0, %v1070
    %v1072 = vpop.f32.mrf.mxu0
    %1073 = vmatprep.mubr.bf16.mxu0 0
    %1074 = vmatmul.mubr.bf16.gmra.mxu0 %v905
    %v1075 = vpop.f32.mrf.mxu0
    %v1076 = vadd.f32 0.0, %v1075
    %v1077 = vpop.f32.mrf.mxu0
    %v1078 = vpop.f32.mrf.mxu0
    %v1079 = vadd.f32 0.0, %v1078
    %v1080 = vpop.f32.mrf.mxu0
    %1081 = vmatprep.mubr.bf16.mxu0 0
    %1082 = vmatmul.mubr.bf16.gmra.mxu0 %v906
    %v1083 = vpop.f32.mrf.mxu0
    %v1084 = vadd.f32 0.0, %v1083
    %v1085 = vpop.f32.mrf.mxu0
    %v1086 = vpop.f32.mrf.mxu0
    %v1087 = vadd.f32 0.0, %v1086
    %v1088 = vpop.f32.mrf.mxu0
    %1089 = vmatprep.mubr.bf16.mxu0 0
    %1090 = vmatmul.mubr.bf16.gmra.mxu0 %v907
    %v1091 = vpop.f32.mrf.mxu0
    %v1092 = vadd.f32 0.0, %v1091
    %v1093 = vpop.f32.mrf.mxu0
    %v1094 = vpop.f32.mrf.mxu0
    %v1095 = vadd.f32 0.0, %v1094
    %v1096 = vpop.f32.mrf.mxu0
    %1097 = vmatprep.mubr.bf16.mxu0 0
    %1098 = vmatmul.mubr.bf16.gmra.mxu0 %v908
    %v1099 = vpop.f32.mrf.mxu0
    %v1100 = vadd.f32 0.0, %v1099
    %v1101 = vpop.f32.mrf.mxu0
    %v1102 = vpop.f32.mrf.mxu0
    %v1103 = vadd.f32 0.0, %v1102
    %v1104 = vpop.f32.mrf.mxu0
    %1105 = vmatprep.mubr.bf16.mxu0 0
    %1106 = vmatmul.mubr.bf16.gmra.mxu0 %v909
    %v1107 = vpop.f32.mrf.mxu0
    %v1108 = vadd.f32 0.0, %v1107
    %v1109 = vpop.f32.mrf.mxu0
    %v1110 = vpop.f32.mrf.mxu0
    %v1111 = vadd.f32 0.0, %v1110
    %v1112 = vpop.f32.mrf.mxu0
    %1113 = vmatprep.mubr.bf16.mxu0 0
    %1114 = vmatmul.mubr.bf16.gmra.mxu0 %v910
    %v1115 = vpop.f32.mrf.mxu0
    %v1116 = vadd.f32 0.0, %v1115
    %v1117 = vpop.f32.mrf.mxu0
    %v1118 = vpop.f32.mrf.mxu0
    %v1119 = vadd.f32 0.0, %v1118
    %v1120 = vpop.f32.mrf.mxu0
    %1121 = vmatprep.mubr.bf16.mxu0 0
    %1122 = vmatmul.mubr.bf16.gmra.mxu0 %v911
    %v1123 = vpop.f32.mrf.mxu0
    %v1124 = vadd.f32 0.0, %v1123
    %v1125 = vpop.f32.mrf.mxu0
    %v1126 = vpop.f32.mrf.mxu0
    %v1127 = vadd.f32 0.0, %v1126
    %v1128 = vpop.f32.mrf.mxu0
    %1129 = vmatprep.mubr.bf16.mxu0 0
    %1130 = vmatmul.mubr.bf16.gmra.mxu0 %v912
    %v1131 = vpop.f32.mrf.mxu0
    %v1132 = vadd.f32 0.0, %v1131
    %v1133 = vpop.f32.mrf.mxu0
    %v1134 = vpop.f32.mrf.mxu0
    %v1135 = vadd.f32 0.0, %v1134
    %v1136 = vpop.f32.mrf.mxu0
    %1137 = vdwg.mxu0
    %v1138 = vld [vmem:[%s6] sm:$0xff]
    %v1140 = vcombine.high %v1138, %v1138
    %1142 = vmatprep.subr.mxu0 0.0
    %1143 = vmatpush1.msra.mxu0 %v1071
    %1144 = vmatprep.subr.mxu0 0.0
    %1145 = vmatpush1.msra.mxu0 %v1068
    %1146 = vmatprep.subr.mxu0 0.0
    %1147 = vmatpush1.msra.mxu0 %v1063
    %1148 = vmatprep.subr.mxu0 0.0
    %1149 = vmatpush1.msra.mxu0 %v1060
    %1150 = vmatprep.subr.mxu0 0.0
    %1151 = vmatpush1.msra.mxu0 %v1055
    %1152 = vmatprep.subr.mxu0 0.0
    %1153 = vmatpush1.msra.mxu0 %v1052
    %1154 = vmatprep.subr.mxu0 0.0
    %1155 = vmatpush1.msra.mxu0 %v1047
    %1156 = vmatprep.subr.mxu0 0.0
    %1157 = vmatpush1.msra.mxu0 %v1044
    %1158 = vmatprep.subr.mxu0 0.0
    %1159 = vmatpush1.msra.mxu0 %v1039
    %1160 = vmatprep.subr.mxu0 0.0
    %1161 = vmatpush1.msra.mxu0 %v1036
    %1162 = vmatprep.subr.mxu0 0.0
    %1163 = vmatpush1.msra.mxu0 %v1031
    %1164 = vmatprep.subr.mxu0 0.0
    %1165 = vmatpush1.msra.mxu0 %v1028
    %1166 = vmatprep.subr.mxu0 0.0
    %1167 = vmatpush1.msra.mxu0 %v1023
    %1168 = vmatprep.subr.mxu0 0.0
    %1169 = vmatpush1.msra.mxu0 %v1020
    %1170 = vmatprep.subr.mxu0 0.0
    %1171 = vmatpush1.msra.mxu0 %v1015
    %1172 = vmatprep.subr.mxu0 0.0
    %1173 = vmatpush1.msra.mxu0 %v1012
    %1174 = vmatprep.subr.mxu0 0.0
    %1175 = vmatpush2.msra.mxu0 %v1135
    %1176 = vmatprep.subr.mxu0 0.0
    %1177 = vmatpush2.msra.mxu0 %v1132
    %1178 = vmatprep.subr.mxu0 0.0
    %1179 = vmatpush2.msra.mxu0 %v1127
    %1180 = vmatprep.subr.mxu0 0.0
    %1181 = vmatpush2.msra.mxu0 %v1124
    %1182 = vmatprep.subr.mxu0 0.0
    %1183 = vmatpush2.msra.mxu0 %v1119
    %1184 = vmatprep.subr.mxu0 0.0
    %1185 = vmatpush2.msra.mxu0 %v1116
    %1186 = vmatprep.subr.mxu0 0.0
    %1187 = vmatpush2.msra.mxu0 %v1111
    %1188 = vmatprep.subr.mxu0 0.0
    %1189 = vmatpush2.msra.mxu0 %v1108
    %1190 = vmatprep.subr.mxu0 0.0
    %1191 = vmatpush2.msra.mxu0 %v1103
    %1192 = vmatprep.subr.mxu0 0.0
    %1193 = vmatpush2.msra.mxu0 %v1100
    %1194 = vmatprep.subr.mxu0 0.0
    %1195 = vmatpush2.msra.mxu0 %v1095
    %1196 = vmatprep.subr.mxu0 0.0
    %1197 = vmatpush2.msra.mxu0 %v1092
    %1198 = vmatprep.subr.mxu0 0.0
    %1199 = vmatpush2.msra.mxu0 %v1087
    %1200 = vmatprep.subr.mxu0 0.0
    %1201 = vmatpush2.msra.mxu0 %v1084
    %1202 = vmatprep.subr.mxu0 0.0
    %1203 = vmatpush2.msra.mxu0 %v1079
    %1204 = vmatprep.subr.mxu0 0.0
    %1205 = vmatpush2.msra.mxu0 %v1076
    %1206 = vmatprep.mubr.f32.mxu0 %v1140
    %1207 = vmatmul.mubr.f32.gmra.mxu0 %v1138
    %v1208 = vpop.f32.mrf.mxu0
    %v1209 = vadd.f32 0.0, %v1208
    %v1210 = vpop.f32.mrf.mxu0
    %1211 = vdwg.mxu0
    %vm1212 = vcmask 519168
    %1213 = vst.msk [vmem:[#allocation2] sm:$0xf] %vm1212, %v1209
    // Predicated region
    $region30: #{tpu_custom_call.1} parent=1 // pred_check
      _
    $region31: #{tpu_custom_call.1} parent=1 // pred_check_branch
      %1215 = sbr.rel (0) target = $region33
    $region32: #{tpu_custom_call.1} parent=1 // pred_region
      %s1217 = ssub.s32 64, 64
      %1218 = vsyncadd [#allocation3], %s1217
      %s1220 = sshll.u32 [#allocation2], 4
      %s1221 = int_to_ptr.vmem [resolvable:$true] %s1220
      %1223 = dma.vmem_to_hbm [thread:$0]  %s1221, 64, %s7, [#allocation3]
    $region33: #{tpu_custom_call.1} parent=1 // pred_fallthru
      _
    // Predicated region
    $region34: #{tpu_custom_call.1} parent=1 // pred_check
      _
    $region35: #{tpu_custom_call.1} parent=1 // pred_check_branch
      %1225 = sbr.rel (0) target = $region37
    $region36: #{tpu_custom_call.1} parent=1 // pred_region
      %1226 = dma.done [#allocation3], 64
    $region37: #{tpu_custom_call.1} parent=1 // pred_fallthru
      _
    %1227 = vsyncpa [#allocation3], 1

</llo_original>
